<compile_context>
chip_gen: v7x
topology: tpu7x:2x2x1
jax: 0.10.0
libtpu: 0.0.40
codegen_flags: <defaults>
</compile_context>

<pallas_src>
import jax
import jax.numpy as jnp
from jax.experimental import pallas as pl
from jax.experimental.pallas import tpu as pltpu


def _cdiv(a, b):
    return -(-a // b)


def _round_up(x, m):
    return _cdiv(x, m) * m


def _choose_tiles(B, C, *, target_block_bytes=4 * 1024 * 1024, max_tc=2048):
    """Pick (tb, tc): lane tile tc (multiple of 128) and row tile tb (multiple of 8)."""
    # Lane (class) tile: full C (rounded to 128) up to max_tc lanes, otherwise
    # split C as evenly as possible into multiples of 128.
    if C <= max_tc:
        tc = _round_up(C, 128)
    else:
        ncj = _cdiv(C, max_tc)
        tc = _round_up(_cdiv(C, ncj), 128)
    # Sublane (row) tile: target ~target_block_bytes of f32 per input block.
    target_rows = max(8, (target_block_bytes // 4) // tc)
    if B <= target_rows:
        tb = _round_up(B, 8)
    else:
        nbi = _cdiv(B, target_rows)
        tb = _round_up(_cdiv(B, nbi), 8)
    # Megacore (v7x has 2 TensorCores): keep at least 2 row blocks when B allows
    # it, so the 'parallel' row axis can be sharded across cores.
    if B > 8 and _cdiv(B, tb) < 2:
        tb = _round_up(_cdiv(B, 2), 8)
    return tb, tc


def _make_loss_kernel(B, C, tb, tc):
    """Kernel closure over the static logical extents and tile sizes."""

    def kernel(pred_ref, y_ref, out_ref):
        i = pl.program_id(0)
        j = pl.program_id(1)

        x = pred_ref[...].astype(jnp.float32)
        y = y_ref[...].astype(jnp.float32)

        # In-bounds mask for ragged edge blocks (B, C need not be tile
        # multiples; the out-of-bounds part of an edge block holds unspecified
        # data, which this mask excludes from the sum).
        row_ids = jax.lax.broadcasted_iota(jnp.int32, (tb, tc), 0)
        col_ids = jax.lax.broadcasted_iota(jnp.int32, (tb, tc), 1)
        in_bounds = (row_ids < (B - i * tb)) & (col_ids < (C - j * tc))

        p = jax.nn.sigmoid(x)
        pos = y > 0.0                    # positive-label path: log(p)
        valid = (y >= 0.0) & in_bounds   # y < 0 (and OOB padding) contributes nothing

        # Fused single-log path: val = p for positives, 1 - p for the rest.
        # The exact-zero -> 1e-20 fixup then matches both PyTorch fixups.
        val = jnp.where(pos, p, 1.0 - p)
        val = jnp.where(val == 0.0, jnp.float32(1e-20), val)
        contrib = jnp.where(valid, jnp.log(val), 0.0)

        # Fold rows in groups of 8 using only VPU vreg adds (no cross-lane XLU
        # reduce, no scalar-unit accumulation) and emit a lane-dense (8, tc)
        # partial slab for this (i, j) block.
        folded = contrib.reshape(tb // 8, 8, tc).sum(axis=0)
        out_ref[...] = folded.reshape(out_ref.shape)

    return kernel


def multi_label_sigmoid_cross_entropy_loss(pred, y):
    """pred, y: (B, C). Returns scalar float32 loss (matches the PyTorch module)."""
    B, C = pred.shape
    assert y.shape == (B, C)

    tb, tc = _choose_tiles(B, C)
    nbi = _cdiv(B, tb)
    nbj = _cdiv(C, tc)

    partials = pl.pallas_call(
        _make_loss_kernel(B, C, tb, tc),
        out_shape=jax.ShapeDtypeStruct((nbi, nbj, 8, tc), jnp.float32),
        grid_spec=pltpu.PrefetchScalarGridSpec(
            num_scalar_prefetch=0,
            grid=(nbi, nbj),
            in_specs=[
                pl.BlockSpec((tb, tc), lambda i, j: (i, j)),
                pl.BlockSpec((tb, tc), lambda i, j: (i, j)),
            ],
            out_specs=pl.BlockSpec((1, 1, 8, tc), lambda i, j: (i, j, 0, 0)),
        ),
        compiler_params=pltpu.CompilerParams(
            dimension_semantics=("parallel", "parallel"),
            vmem_limit_bytes=32 * 1024 * 1024,
        ),
    )(pred, y)

    # Tiny finish: sum all per-block partial slabs, negate, normalize by B.
    return -jnp.sum(partials) / jnp.float32(B)


def _reference_loss(pred, y):
    """Pure-JAX reference matching the PyTorch module."""
    p = jax.nn.sigmoid(pred.astype(jnp.float32))
    pos_mask = y > 0
    neg_mask = y == 0
    pos_val = jnp.where(p == 0.0, 1e-20, p)
    neg_val_raw = 1.0 - p
    neg_val = jnp.where(neg_val_raw == 0.0, 1e-20, neg_val_raw)
    pos_part = jnp.sum(jnp.where(pos_mask, jnp.log(pos_val), 0.0))
    neg_part = jnp.sum(jnp.where(neg_mask, jnp.log(neg_val), 0.0))
    return -(pos_part + neg_part) / pred.shape[0]


if __name__ == "__main__":
    key = jax.random.PRNGKey(0)
    k1, k2 = jax.random.split(key)

    # Deliberately non-tile-multiple shapes to exercise the in-kernel ragged
    # edge masking (no wrapper-side padding anymore).
    B, C = 18, 200
    pred = jax.random.normal(k1, (B, C), dtype=jnp.float32) * 3.0
    # Multi-label targets in {0, 1}; sprinkle in a few -1 "ignore" labels,
    # which (like the PyTorch boolean indexing) are excluded from the loss.
    y_raw = jax.random.uniform(k2, (B, C))
    y = jnp.where(y_raw > 0.7, 1.0, jnp.where(y_raw < 0.05, -1.0, 0.0)).astype(jnp.float32)

    loss = multi_label_sigmoid_cross_entropy_loss(pred, y)
    loss = jax.block_until_ready(loss)

    ref = _reference_loss(pred, y)
    assert jnp.allclose(loss, ref, rtol=1e-5, atol=1e-5), (loss, ref)

    print("KERNEL_OK")
</pallas_src>

<mosaic_0001>
module attributes {stable_mosaic.version = 11 : i64} {
  func.func @kernel(%arg0: i32, %arg1: i32, %arg2: memref<16x256xf32, #tpu.memory_space<vmem>>, %arg3: memref<16x256xf32, #tpu.memory_space<vmem>>, %arg4: memref<1x1x8x256xf32, #tpu.memory_space<vmem>>) attributes {dimension_semantics = [#tpu.dimension_semantics<parallel>, #tpu.dimension_semantics<parallel>], iteration_bounds = array<i64: 2, 1>, scalar_prefetch = 0 : i64, scratch_operands = 0 : i64, tpu.core_type = #tpu.core_type<tc>, window_params = [{transform_indices = @transform_0, window_bounds = array<i64: 16, 256>}, {transform_indices = @transform_1, window_bounds = array<i64: 16, 256>}, {transform_indices = @transform_2, window_bounds = array<i64: 1, 1, 8, 256>}]} {
    %c0 = arith.constant 0 : index
    %c0_0 = arith.constant 0 : index
    %0 = vector.load %arg2[%c0, %c0_0] : memref<16x256xf32, #tpu.memory_space<vmem>>, vector<16x256xf32>
    %c0_1 = arith.constant 0 : index
    %c0_2 = arith.constant 0 : index
    %1 = vector.load %arg3[%c0_1, %c0_2] : memref<16x256xf32, #tpu.memory_space<vmem>>, vector<16x256xf32>
    %2 = tpu.iota {dimensions = array<i32: 0>} : vector<16x256xi32>
    %3 = tpu.iota {dimensions = array<i32: 1>} : vector<16x256xi32>
    %c16_i32 = arith.constant 16 : i32
    %4 = arith.muli %arg0, %c16_i32 : i32
    %c18_i32 = arith.constant 18 : i32
    %5 = arith.subi %c18_i32, %4 : i32
    %6 = vector.broadcast %5 : i32 to vector<16x256xi32>
    %7 = arith.cmpi slt, %2, %6 : vector<16x256xi32>
    %c256_i32 = arith.constant 256 : i32
    %8 = arith.muli %arg1, %c256_i32 : i32
    %c200_i32 = arith.constant 200 : i32
    %9 = arith.subi %c200_i32, %8 : i32
    %10 = vector.broadcast %9 : i32 to vector<16x256xi32>
    %11 = arith.cmpi slt, %3, %10 : vector<16x256xi32>
    %12 = arith.andi %7, %11 : vector<16x256xi1>
    %13 = arith.negf %0 : vector<16x256xf32>
    %14 = math.exp %13 : vector<16x256xf32>
    %cst = arith.constant 1.000000e+00 : f32
    %15 = vector.broadcast %cst : f32 to vector<16x256xf32>
    %16 = arith.addf %15, %14 : vector<16x256xf32>
    %17 = arith.divf %15, %16 : vector<16x256xf32>
    %cst_3 = arith.constant 0.000000e+00 : f32
    %18 = vector.broadcast %cst_3 : f32 to vector<16x256xf32>
    %19 = arith.cmpf ogt, %1, %18 : vector<16x256xf32>
    %cst_4 = arith.constant 0.000000e+00 : f32
    %20 = vector.broadcast %cst_4 : f32 to vector<16x256xf32>
    %21 = arith.cmpf oge, %1, %20 : vector<16x256xf32>
    %22 = arith.andi %21, %12 : vector<16x256xi1>
    %cst_5 = arith.constant 1.000000e+00 : f32
    %23 = vector.broadcast %cst_5 : f32 to vector<16x256xf32>
    %24 = arith.subf %23, %17 : vector<16x256xf32>
    %25 = arith.select %19, %17, %24 : vector<16x256xi1>, vector<16x256xf32>
    %cst_6 = arith.constant 0.000000e+00 : f32
    %26 = vector.broadcast %cst_6 : f32 to vector<16x256xf32>
    %27 = arith.cmpf oeq, %25, %26 : vector<16x256xf32>
    %cst_7 = arith.constant 9.99999968E-21 : f32
    %28 = vector.broadcast %cst_7 : f32 to vector<16x256xf32>
    %29 = arith.select %27, %28, %25 : vector<16x256xi1>, vector<16x256xf32>
    %30 = math.log %29 : vector<16x256xf32>
    %cst_8 = arith.constant 0.000000e+00 : f32
    %31 = vector.broadcast %cst_8 : f32 to vector<16x256xf32>
    %32 = arith.select %22, %30, %31 : vector<16x256xi1>, vector<16x256xf32>
    %33 = vector.shape_cast %32 : vector<16x256xf32> to vector<2x8x256xf32>
    %cst_9 = arith.constant dense<0.000000e+00> : vector<8x256xf32>
    %34 = vector.multi_reduction <add>, %33, %cst_9 [0] : vector<2x8x256xf32> to vector<8x256xf32>
    %35 = vector.shape_cast %34 : vector<8x256xf32> to vector<1x1x8x256xf32>
    %c0_10 = arith.constant 0 : index
    %c0_11 = arith.constant 0 : index
    %c0_12 = arith.constant 0 : index
    %c0_13 = arith.constant 0 : index
    %36 = vector.load %arg4[%c0_10, %c0_11, %c0_12, %c0_13] : memref<1x1x8x256xf32, #tpu.memory_space<vmem>>, vector<1x1x8x256xf32>
    tpu.vector_store %arg4[%c0_10, %c0_11, %c0_12, %c0_13], %35 {strides = array<i32>} : memref<1x1x8x256xf32, #tpu.memory_space<vmem>>, vector<1x1x8x256xf32>,
    return
  }
  func.func @transform_0(%arg0: i32, %arg1: i32) -> (i32, i32) {
    %c0_i32 = arith.constant 0 : i32
    return %arg0, %arg1 : i32, i32
  }
  func.func @transform_1(%arg0: i32, %arg1: i32) -> (i32, i32) {
    %c0_i32 = arith.constant 0 : i32
    return %arg0, %arg1 : i32, i32
  }
  func.func @transform_2(%arg0: i32, %arg1: i32) -> (i32, i32, i32, i32) {
    %c0_i32 = arith.constant 0 : i32
    %c0_i32_0 = arith.constant 0 : i32
    %c0_i32_1 = arith.constant 0 : i32
    return %arg0, %arg1, %c0_i32, %c0_i32_0 : i32, i32, i32, i32
  }
}

</mosaic_0001>

<llo_original>
// kernel: tpu_custom_call.1
$region0: #{tpu_custom_call.1}
  #allocation0 [shape = 'u32[]', space=smem, size = 0x4, offset = 0x4, fixed_abs, tag = 'smem constant byte address 0x4 - core index']
  #allocation1 [shape = 'u32[144,128]{1,0:T(1,128)}', space=vmem, size = 0x12000, scoped, tag = 'internal scratch']
  %s0 = inlined_call_operand.hbm [shape: f32[18,200], index: 0, kind: input, shape index: {}]
  %s1 = inlined_call_operand.hbm [shape: f32[18,200], index: 1, kind: input, shape index: {}]
  %s2 = inlined_call_operand.hbm [shape: f32[2,1,8,256], index: 2, kind: output, shape index: {}]
  %s3 = sld [smem:[#allocation0]]
  $region49: #{tpu_custom_call.1} parent=0
    _
  %s5 = ssub.s32 1, %s3
  %s6 = scalar_select 0, %s5, %s3
  $region1: #{tpu_custom_call.1} parent=0
    #allocation2 [shape = 'u8[32768]{0}', space=vmem, size = 0x8000, scoped, tag = 'input window, operand 0']
    #allocation3 [shape = 's32[2]{0}', space=sflag, size = 0x8, scoped, tag = 'scoped memory for tpu_custom_call.1']
    #allocation4 [shape = 's32[2]{0}', space=sflag, size = 0x8, scoped, tag = 'scoped memory for tpu_custom_call.1']
    #allocation5 [shape = 'u8[32768]{0}', space=vmem, size = 0x8000, scoped, tag = 'input window, operand 1']
    #allocation6 [shape = 's32[2]{0}', space=sflag, size = 0x8, scoped, tag = 'scoped memory for tpu_custom_call.1']
    #allocation7 [shape = 'u8[16384]{0}', space=vmem, size = 0x4000, scoped, tag = 'output window, operand 0']
    %7 = vsyncpa [#allocation3], 0
    %s8 = scalar_lea.sflag [#allocation3], 1
    %9 = vsyncpa %s8, 0
    %10 = vsyncpa [#allocation6], 0
    %s11 = scalar_lea.sflag [#allocation6], 1
    %12 = vsyncpa %s11, 0
    %13 = vsyncpa [#allocation4], 0
    %s14 = scalar_lea.sflag [#allocation4], 1
    %15 = vsyncpa %s14, 0
    loop: start=0, step=1, limit=4
    $region2: #{tpu_custom_call.1} parent=1 // loop_pre_header
      _
    $region3: #{tpu_custom_call.1} parent=1 // loop_header
      %s17 = sphi 0, %s21
      %p18 = scmp.ge.s32.totalorder %s17, 4
      %s24 = sphi 0, %s36
      %s25 = sphi 0, %s32
      %s26 = sphi 0, %s24
      %s27 = sphi 0, %s25
      %s28 = sphi 0, %s26
      %s29 = sphi 0, %s27
      %s41 = sphi 0, %s43
      %s44 = sphi 0, %s41
      %s45 = sphi 0, %s44
      %s61 = sphi 0, %s45
      %s69 = sphi 0, %s71
      %s72 = sphi 0, %s69
      %s73 = sphi 0, %s72
      %s89 = sphi 0, %s73
      %s97 = sphi 0, %s99
      %s100 = sphi 0, %s97
      %s101 = sphi 0, %s100
      %s117 = sphi 0, %s101
    $region4: #{tpu_custom_call.1} parent=1 // loop_header_branch
      %20 = sbr.rel (%p18) target = $region8
    $region5: #{tpu_custom_call.1} parent=1 // loop_body
      %s22 = ssub.s32 %s17, 1
      %s23 = ssub.s32 %s17, 2
      %s30 = sadd.s32 1, %s25
      %p31 = scmp.ge.s32.totalorder %s30, 1
      %s32 = scalar_select %p31, 0, %s30
      %s33 = sadd.s32 1, %s24
      %s34 = scalar_select %p31, %s33, %s24
      %p35 = scmp.ge.s32.totalorder %s34, 2
      %s36 = scalar_select %p35, 0, %s34
      %s37 = ssub.s32 %s24, %s36
      %s38 = ssub.s32 %s25, %s32
      %s39 = sor.u32 %s37, %s38
      %p40 = scmp.eq.s32.totalorder %s39, 0
      %s42 = sadd.s32 %s41, 1
      %s43 = scalar_select %p40, %s41, %s42
      %p46 = pneg %p40
      %p47 = scmp.eq.s32.totalorder %s17, 1
      %p48 = por %p46, %p47
      %p49 = scmp.ne.s32.totalorder %s41, %s44
      %p50 = scmp.eq.s32.totalorder %s17, 0
      %p51 = por %p49, %p50
      %p52 = scmp.ne.s32.totalorder %s41, %s44
      %p53 = scmp.eq.s32.totalorder %s22, 1
      %p54 = por %p52, %p53
      %p55 = scmp.ne.s32.totalorder %s44, %s45
      %p56 = scmp.eq.s32.totalorder %s22, 0
      %p57 = por %p55, %p56
      %p58 = scmp.ne.s32.totalorder %s44, %s45
      %p59 = scmp.eq.s32.totalorder %s23, 1
      %p60 = por %p58, %p59
      %p62 = scmp.ne.s32.totalorder %s45, %s61
      %p63 = scmp.eq.s32.totalorder %s23, 0
      %p64 = por %p62, %p63
      %s65 = ssub.s32 %s24, %s36
      %s66 = ssub.s32 %s25, %s32
      %s67 = sor.u32 %s65, %s66
      %p68 = scmp.eq.s32.totalorder %s67, 0
      %s70 = sadd.s32 %s69, 1
      %s71 = scalar_select %p68, %s69, %s70
      %p74 = pneg %p68
      %p75 = scmp.eq.s32.totalorder %s17, 1
      %p76 = por %p74, %p75
      %p77 = scmp.ne.s32.totalorder %s69, %s72
      %p78 = scmp.eq.s32.totalorder %s17, 0
      %p79 = por %p77, %p78
      %p80 = scmp.ne.s32.totalorder %s69, %s72
      %p81 = scmp.eq.s32.totalorder %s22, 1
      %p82 = por %p80, %p81
      %p83 = scmp.ne.s32.totalorder %s72, %s73
      %p84 = scmp.eq.s32.totalorder %s22, 0
      %p85 = por %p83, %p84
      %p86 = scmp.ne.s32.totalorder %s72, %s73
      %p87 = scmp.eq.s32.totalorder %s23, 1
      %p88 = por %p86, %p87
      %p90 = scmp.ne.s32.totalorder %s73, %s89
      %p91 = scmp.eq.s32.totalorder %s23, 0
      %p92 = por %p90, %p91
      %s93 = ssub.s32 %s24, %s36
      %s94 = ssub.s32 %s25, %s32
      %s95 = sor.u32 %s93, %s94
      %p96 = scmp.eq.s32.totalorder %s95, 0
      %s98 = sadd.s32 %s97, 1
      %s99 = scalar_select %p96, %s97, %s98
      %p102 = pneg %p96
      %p103 = scmp.eq.s32.totalorder %s17, 1
      %p104 = por %p102, %p103
      %p105 = scmp.ne.s32.totalorder %s97, %s100
      %p106 = scmp.eq.s32.totalorder %s17, 0
      %p107 = por %p105, %p106
      %p108 = scmp.ne.s32.totalorder %s97, %s100
      %p109 = scmp.eq.s32.totalorder %s22, 1
      %p110 = por %p108, %p109
      %p111 = scmp.ne.s32.totalorder %s100, %s101
      %p112 = scmp.eq.s32.totalorder %s22, 0
      %p113 = por %p111, %p112
      %p114 = scmp.ne.s32.totalorder %s100, %s101
      %p115 = scmp.eq.s32.totalorder %s23, 1
      %p116 = por %p114, %p115
      %p118 = scmp.ne.s32.totalorder %s101, %s117
      %p119 = scmp.eq.s32.totalorder %s23, 0
      %p120 = por %p118, %p119
      %p121 = scmp.le.s32.totalorder 1, %s17
      %p122 = scmp.lt.s32.totalorder %s17, 3
      %p123 = pnand %p121, %p122
      %p124 = pneg %p123
      // Predicated region
      $region9: #{tpu_custom_call.1} parent=5 // pred_check
        _
      $region10: #{tpu_custom_call.1} parent=5 // pred_check_branch
        %126 = sbr.rel (%p123) target = $region12
      $region11: #{tpu_custom_call.1} parent=5 // pred_region
        %s127 = ssub.s32 %s17, 1
      $region12: #{tpu_custom_call.1} parent=5 // pred_fallthru
        _
      %p128 = scmp.lt.s32.totalorder %s17, 2
      // Predicated region
      $region13: #{tpu_custom_call.1} parent=5 // pred_check
        %p129 = pneg %p128
      $region14: #{tpu_custom_call.1} parent=5 // pred_check_branch
        %131 = sbr.rel (%p129) target = $region16
      $region15: #{tpu_custom_call.1} parent=5 // pred_region
        // Predicated region
        $region17: #{tpu_custom_call.1} parent=15 // pred_check
          %p132 = pneg %p51
        $region18: #{tpu_custom_call.1} parent=15 // pred_check_branch
          %134 = sbr.rel (%p132) target = $region20
        $region19: #{tpu_custom_call.1} parent=15 // pred_region
          %s135 = sand.u32 %s41, 1
          %s136 = scalar_lea.sflag [#allocation3], %s135
          %s137 = sand.u32 %s41, 1
          %s138 = smul.addr %s137, 32
          %s139 = scalar_lea.vmem [#allocation2], %s138
          %s140 = smul.u32 2, %s24
          %s141 = smul.u32 2, %s25
          %s142 = ssub.s32 3, %s140
          %p143 = scmp.lt.s32.totalorder %s142, 2
          %s144 = scalar_select %p143, %s142, 2
          %s145 = smul.u32 128, %s144
          %s146 = smul.u32 %s145, 2
          %s148 = ssub.s32 512, %s146
          %149 = vsyncadd %s136, %s148
          %p150 = scmp.ne.s32.totalorder 0, %s146
          %s151 = smul.addr %s140, 2
          %s152 = sadd.s32 %s141, %s151
          %s153 = smul.addr %s152, 128
          %s154 = scalar_lea.hbm %s0, %s153
          %s155 = smul.u32 16, %s144
          %s156 = sshll.u32 %s139, 4
          %s157 = int_to_ptr.vmem [resolvable:$true] %s156
          %s158 = sshll.u32 %s155, 4
          %162 = dma.hbm_to_vmem [thread:$0]  (%p150), %s154, %s158, %s157, %s136, 256, 256, 16
        $region20: #{tpu_custom_call.1} parent=15 // pred_fallthru
          _
        // Predicated region
        $region21: #{tpu_custom_call.1} parent=15 // pred_check
          %p163 = pneg %p79
        $region22: #{tpu_custom_call.1} parent=15 // pred_check_branch
          %165 = sbr.rel (%p163) target = $region24
        $region23: #{tpu_custom_call.1} parent=15 // pred_region
          %s166 = sand.u32 %s69, 1
          %s167 = scalar_lea.sflag [#allocation6], %s166
          %s168 = sand.u32 %s69, 1
          %s169 = smul.addr %s168, 32
          %s170 = scalar_lea.vmem [#allocation5], %s169
          %s171 = smul.u32 2, %s24
          %s172 = smul.u32 2, %s25
          %s173 = ssub.s32 3, %s171
          %p174 = scmp.lt.s32.totalorder %s173, 2
          %s175 = scalar_select %p174, %s173, 2
          %s176 = smul.u32 128, %s175
          %s177 = smul.u32 %s176, 2
          %s179 = ssub.s32 512, %s177
          %180 = vsyncadd %s167, %s179
          %p181 = scmp.ne.s32.totalorder 0, %s177
          %s182 = smul.addr %s171, 2
          %s183 = sadd.s32 %s172, %s182
          %s184 = smul.addr %s183, 128
          %s185 = scalar_lea.hbm %s1, %s184
          %s186 = smul.u32 16, %s175
          %s187 = sshll.u32 %s170, 4
          %s188 = int_to_ptr.vmem [resolvable:$true] %s187
          %s189 = sshll.u32 %s186, 4
          %193 = dma.hbm_to_vmem [thread:$0]  (%p181), %s185, %s189, %s188, %s167, 256, 256, 16
        $region24: #{tpu_custom_call.1} parent=15 // pred_fallthru
          _
      $region16: #{tpu_custom_call.1} parent=5 // pred_fallthru
        _
      %p194 = scmp.le.s32.totalorder 1, %s17
      %p195 = scmp.lt.s32.totalorder %s17, 3
      %p196 = pnand %p194, %p195
      %p197 = pneg %p196
      // Predicated region
      $region25: #{tpu_custom_call.1} parent=5 // pred_check
        _
      $region26: #{tpu_custom_call.1} parent=5 // pred_check_branch
        %199 = sbr.rel (%p196) target = $region28
      $region27: #{tpu_custom_call.1} parent=5 // pred_region
        %s200 = ssub.s32 %s17, 1
        %s201 = sand.u32 %s44, 1
        %s202 = scalar_lea.sflag [#allocation3], %s201
        %s203 = sand.u32 %s44, 1
        %s204 = smul.addr %s203, 32
        %s205 = scalar_lea.vmem [#allocation2], %s204
        // Predicated region
        $region29: #{tpu_custom_call.1} parent=27 // pred_check
          %p206 = pneg %p57
        $region30: #{tpu_custom_call.1} parent=27 // pred_check_branch
          %208 = sbr.rel (%p206) target = $region32
        $region31: #{tpu_custom_call.1} parent=27 // pred_region
          %209 = dma.done %s202, 512
        $region32: #{tpu_custom_call.1} parent=27 // pred_fallthru
          _
        %s210 = sand.u32 %s72, 1
        %s211 = scalar_lea.sflag [#allocation6], %s210
        %s212 = sand.u32 %s72, 1
        %s213 = smul.addr %s212, 32
        %s214 = scalar_lea.vmem [#allocation5], %s213
        // Predicated region
        $region33: #{tpu_custom_call.1} parent=27 // pred_check
          %p215 = pneg %p85
        $region34: #{tpu_custom_call.1} parent=27 // pred_check_branch
          %217 = sbr.rel (%p215) target = $region36
        $region35: #{tpu_custom_call.1} parent=27 // pred_region
          %218 = dma.done %s211, 512
        $region36: #{tpu_custom_call.1} parent=27 // pred_fallthru
          _
        %s219 = sand.u32 %s44, 1
        %s220 = scalar_lea.sflag [#allocation3], %s219
        %s221 = sand.u32 %s44, 1
        %s222 = smul.addr %s221, 32
        %s223 = scalar_lea.vmem [#allocation2], %s222
        %p224 = pneg %p57
        %p225 = pneg %p54
        %s226 = sand.u32 %s72, 1
        %s227 = scalar_lea.sflag [#allocation6], %s226
        %s228 = sand.u32 %s72, 1
        %s229 = smul.addr %s228, 32
        %s230 = scalar_lea.vmem [#allocation5], %s229
        %p231 = pneg %p85
        %p232 = pneg %p82
        %p233 = pneg %p113
        %p234 = pneg %p110
        %s235 = sand.u32 %s100, 1
        %s236 = scalar_lea.sflag [#allocation4], %s235
        %s237 = sand.u32 %s100, 1
        %s238 = smul.addr %s237, 16
        %s239 = scalar_lea.vmem [#allocation7], %s238
        %s240 = smul.u32 2, %s26
        %s241 = smul.u32 2, %s27
        %s242 = ssub.s32 3, %s240
        %p243 = scmp.lt.s32.totalorder %s242, 2
        %s244 = scalar_select %p243, %s242, 2
        %s245 = smul.u32 128, %s244
        %s246 = smul.u32 %s245, 2
        %s247 = smul.u32 2, %s26
        %s248 = smul.u32 2, %s27
        %s249 = ssub.s32 3, %s247
        %p250 = scmp.lt.s32.totalorder %s249, 2
        %s251 = scalar_select %p250, %s249, 2
        %s252 = smul.u32 128, %s251
        %s253 = smul.u32 %s252, 2
        %v254 = vld [vmem:[%s205] sm:$0xff]
        %v255 = vld [vmem:[%s205 + $0x8] sm:$0xff]
        %v256 = vld [vmem:[%s205 + $0x10] sm:$0xff]
        %v257 = vld [vmem:[%s205 + $0x18] sm:$0xff]
        %v258 = vld [vmem:[%s214] sm:$0xff]
        %v259 = vld [vmem:[%s214 + $0x8] sm:$0xff]
        %v260 = vld [vmem:[%s214 + $0x10] sm:$0xff]
        %v261 = vld [vmem:[%s214 + $0x18] sm:$0xff]
        %v262 = vlaneseq
        %v263 = vshrl.u32 %v262, 7
        %v264 = vadd.s32 %v263, 8
        %v265 = vlaneseq
        %v266 = vand.u32 %v265, 127
        %v267 = vadd.s32 %v266, 128
        %s268 = smul.u32 %s26, 16
        %s269 = ssub.s32 18, %s268
        %v270 = vstv %s269
        %vm271 = vcmp.lt.s32.totalorder %v263, %v270
        %vm272 = vcmp.lt.s32.totalorder %v264, %v270
        %s273 = smul.u32 %s27, 256
        %s274 = ssub.s32 200, %s273
        %v275 = vstv %s274
        %vm276 = vcmp.lt.s32.totalorder %v266, %v275
        %vm277 = vcmp.lt.s32.totalorder %v267, %v275
        %vm278 = vmand %vm271, %vm276
        %vm279 = vmand %vm271, %vm277
        %vm280 = vmand %vm272, %vm276
        %vm281 = vmand %vm272, %vm277
        %v282 = vxor.u32 %v254, 2147483648
        %v283 = vxor.u32 %v255, 2147483648
        %v284 = vxor.u32 %v256, 2147483648
        %v285 = vxor.u32 %v257, 2147483648
        %v286 = vmul.f32 %v282, 1.442695
        %v287 = vpow.pop %v286
        %v288 = vmul.f32 %v283, 1.442695
        %v289 = vpow.pop %v288
        %v290 = vmul.f32 %v284, 1.442695
        %v291 = vpow.pop %v290
        %v292 = vmul.f32 %v285, 1.442695
        %v293 = vpow.pop %v292
        %v294 = vadd.f32 %v287, 1.0
        %v295 = vadd.f32 %v289, 1.0
        %v296 = vadd.f32 %v291, 1.0
        %v297 = vadd.f32 %v293, 1.0
        %v298 = vrcp.pop %v294
        %v299 = vmul.f32 1.0, %v298
        %v300 = vrcp.pop %v295
        %v301 = vmul.f32 1.0, %v300
        %v302 = vrcp.pop %v296
        %v303 = vmul.f32 1.0, %v302
        %v304 = vrcp.pop %v297
        %v305 = vmul.f32 1.0, %v304
        %vm306 = vcmp.gt.f32.partialorder %v258, 0.0
        %vm307 = vcmp.gt.f32.partialorder %v259, 0.0
        %vm308 = vcmp.gt.f32.partialorder %v260, 0.0
        %vm309 = vcmp.gt.f32.partialorder %v261, 0.0
        %vm310 = vcmp.ge.f32.partialorder %v258, 0.0
        %vm311 = vcmp.ge.f32.partialorder %v259, 0.0
        %vm312 = vcmp.ge.f32.partialorder %v260, 0.0
        %vm313 = vcmp.ge.f32.partialorder %v261, 0.0
        %vm314 = vmand %vm310, %vm278
        %vm315 = vmand %vm311, %vm279
        %vm316 = vmand %vm312, %vm280
        %vm317 = vmand %vm313, %vm281
        %v318 = vsub.f32 1.0, %v299
        %v319 = vsub.f32 1.0, %v301
        %v320 = vsub.f32 1.0, %v303
        %v321 = vsub.f32 1.0, %v305
        %v322 = vsel %vm306, %v299, %v318
        %v323 = vsel %vm307, %v301, %v319
        %v324 = vsel %vm308, %v303, %v320
        %v325 = vsel %vm309, %v305, %v321
        %vm326 = vcmp.eq.f32.partialorder %v322, 0.0
        %vm327 = vcmp.eq.f32.partialorder %v323, 0.0
        %vm328 = vcmp.eq.f32.partialorder %v324, 0.0
        %vm329 = vcmp.eq.f32.partialorder %v325, 0.0
        %v330 = vsel %vm326, 1e-20, %v322
        %v331 = vsel %vm327, 1e-20, %v323
        %v332 = vsel %vm328, 1e-20, %v324
        %v333 = vsel %vm329, 1e-20, %v325
        %v334 = vlog2.pop %v330
        %v335 = vmul.f32 %v334, 0.6931472
        %v336 = vlog2.pop %v331
        %v337 = vmul.f32 %v336, 0.6931472
        %v338 = vlog2.pop %v332
        %v339 = vmul.f32 %v338, 0.6931472
        %v340 = vlog2.pop %v333
        %v341 = vmul.f32 %v340, 0.6931472
        %v342 = vsel %vm314, %v335, 0.0
        %v343 = vsel %vm315, %v337, 0.0
        %v344 = vsel %vm316, %v339, 0.0
        %v345 = vsel %vm317, %v341, 0.0
        %v346 = vadd.f32 %v342, %v344
        %v347 = vadd.f32 %v343, %v345
        %348 = vst [vmem:[%s239] sm:$0xff] %v346
        %349 = vst [vmem:[%s239 + $0x8] sm:$0xff] %v347
        %s350 = sand.u32 %s100, 1
        %s351 = scalar_lea.sflag [#allocation4], %s350
        %s352 = sand.u32 %s100, 1
        %s353 = smul.addr %s352, 16
        %s354 = scalar_lea.vmem [#allocation7], %s353
        // Predicated region
        $region37: #{tpu_custom_call.1} parent=27 // pred_check
          %p355 = pneg %p110
        $region38: #{tpu_custom_call.1} parent=27 // pred_check_branch
          %357 = sbr.rel (%p355) target = $region40
        $region39: #{tpu_custom_call.1} parent=27 // pred_region
          %s359 = ssub.s32 256, 256
          %360 = vsyncadd %s351, %s359
          %s361 = smul.addr %s27, 2
          %s362 = smul.addr %s26, 2
          %s363 = sadd.s32 %s361, %s362
          %s364 = smul.addr %s363, 128
          %s365 = scalar_lea.hbm %s2, %s364
          %s367 = sshll.u32 %s354, 4
          %s368 = int_to_ptr.vmem [resolvable:$true] %s367
          %370 = dma.vmem_to_hbm [thread:$0]  %s368, 256, %s365, %s351
        $region40: #{tpu_custom_call.1} parent=27 // pred_fallthru
          _
      $region28: #{tpu_custom_call.1} parent=5 // pred_fallthru
        _
      %p371 = scmp.le.s32.totalorder 2, %s17
      // Predicated region
      $region41: #{tpu_custom_call.1} parent=5 // pred_check
        %p372 = pneg %p371
      $region42: #{tpu_custom_call.1} parent=5 // pred_check_branch
        %374 = sbr.rel (%p372) target = $region44
      $region43: #{tpu_custom_call.1} parent=5 // pred_region
        %s375 = ssub.s32 %s17, 2
        // Predicated region
        $region45: #{tpu_custom_call.1} parent=43 // pred_check
          %p376 = pneg %p116
        $region46: #{tpu_custom_call.1} parent=43 // pred_check_branch
          %378 = sbr.rel (%p376) target = $region48
        $region47: #{tpu_custom_call.1} parent=43 // pred_region
          %s379 = sand.u32 %s101, 1
          %s380 = scalar_lea.sflag [#allocation4], %s379
          %s381 = sand.u32 %s101, 1
          %s382 = smul.addr %s381, 16
          %s383 = scalar_lea.vmem [#allocation7], %s382
          %384 = dma.done %s380, 256
        $region48: #{tpu_custom_call.1} parent=43 // pred_fallthru
          _
      $region44: #{tpu_custom_call.1} parent=5 // pred_fallthru
        _
    $region6: #{tpu_custom_call.1} parent=1 // loop_footer
      %s21 = sadd.s32 1, %s17
    $region7: #{tpu_custom_call.1} parent=1 // loop_footer_branch
      %16 = sbr.rel target = $region3
    $region8: #{tpu_custom_call.1} parent=1 // loop_exit
      _
    %385 = vsyncpa [#allocation3], 1
    %s386 = scalar_lea.sflag [#allocation3], 1
    %387 = vsyncpa %s386, 1
    %388 = vsyncpa [#allocation6], 1
    %s389 = scalar_lea.sflag [#allocation6], 1
    %390 = vsyncpa %s389, 1
    %391 = vsyncpa [#allocation4], 1
    %s392 = scalar_lea.sflag [#allocation4], 1
    %393 = vsyncpa %s392, 1

</llo_original>
